<compile_context>
chip_gen: v7x
topology: tpu7x:2x2x1
jax: 0.10.0
libtpu: 0.0.40
codegen_flags: <defaults>
</compile_context>

<pallas_src>
import math
import jax
import jax.numpy as jnp
from jax.experimental import pallas as pl
from jax.experimental.pallas import tpu as pltpu


# --------------------------------------------------------------- kernels ----

def _linear_kernel_single_k(x_ref, w_ref, b_ref, o_ref):
    # Whole contraction fits in one step: no scratch, no branches.
    acc = jnp.dot(x_ref[...], w_ref[...], preferred_element_type=jnp.float32)
    o_ref[...] = (acc + b_ref[...].astype(jnp.float32)).astype(o_ref.dtype)


def _linear_kernel_multi_k(x_ref, w_ref, b_ref, o_ref, acc_ref):
    k = pl.program_id(2)

    @pl.when(k == 0)
    def _init():
        # Seed the f32 accumulator with the bias -> no separate epilogue add.
        acc_ref[...] = b_ref[...].astype(jnp.float32)

    acc_ref[...] += jnp.dot(x_ref[...], w_ref[...],
                            preferred_element_type=jnp.float32)

    @pl.when(k == pl.num_programs(2) - 1)
    def _store():
        o_ref[...] = acc_ref[...].astype(o_ref.dtype)


# ------------------------------------------------------------ tile planner --

def _pick_tile(dim, preferred, align):
    """Largest tile <= preferred that is a multiple of `align` and divides dim.

    Falls back to the full dimension, which is always a legal block shape."""
    if dim >= align and dim % align == 0:
        t = min(preferred, dim)
        t -= t % align
        while t >= align:
            if dim % t == 0:
                return t
            t -= align
    return dim


def _vmem_budget_bytes():
    """Generation-aware VMEM budget (leaves headroom for internal scratch)."""
    cap = 128 << 20  # v5e / v6e physical
    try:
        info = pltpu.get_tpu_info()
        cap = int(getattr(info, "vmem_capacity_bytes", cap) or cap)
    except Exception:
        pass
    return int(0.75 * cap)  # ~96 MiB on v5e/v6e, ~48 MiB on v7x


def _plan_tiles(M, N, K, in_sz, b_sz, o_sz, budget, m_align):
    """Pick (tm, tn, tk): lane-dense, MXU-filling, inside the VMEM budget."""
    pref_m, pref_n, pref_k = 512, 512, 2048
    while True:
        tm = _pick_tile(M, pref_m, m_align)
        tn = _pick_tile(N, pref_n, 128)
        tk = _pick_tile(K, pref_k, 128)
        need = (2 * (tm * tk * in_sz + tk * tn * in_sz
                     + tm * tn * b_sz + tm * tn * o_sz)
                + tm * tn * 4)                       # f32 accumulator
        if need <= budget:
            break
        if pref_k > 128:                             # shrink tk first (no HBM cost)
            pref_k //= 2
        elif pref_n > 128:
            pref_n //= 2
        elif pref_m > m_align:
            pref_m = max(m_align, pref_m // 2)
        else:
            break                                    # smallest legal plan

    # Keep the parallel grid product >= 2 so both v7x TensorCores get work.
    if (M // tm) * (N // tn) < 2:
        if M // tm < 2:
            tm2 = _pick_tile(M, max(m_align, tm // 2), m_align)
            if M // tm2 >= 2:
                tm = tm2
        if (M // tm) * (N // tn) < 2 and N // tn < 2:
            tn2 = _pick_tile(N, max(128, tn // 2), 128)
            if N // tn2 >= 2:
                tn = tn2
    return tm, tn, tk


# --------------------------------------------------------------- wrapper ----

def linear_transform(x, weights, bias, *, compute_dtype=jnp.bfloat16,
                     out_dtype=None, tm=None, tn=None, tk=None):
    """y = x @ weights + bias  (matches Linear_Transform.forward)."""
    M, K = x.shape
    Kw, N = weights.shape
    assert K == Kw, f"matmul dim mismatch: x {x.shape} vs weights {weights.shape}"
    assert bias.shape == (M, N), f"bias shape {bias.shape} != {(M, N)}"
    out_dtype = out_dtype or x.dtype

    if compute_dtype is not None:
        # bf16 operands feed the MXU at full rate; accumulation stays f32.
        x = x.astype(compute_dtype)
        weights = weights.astype(compute_dtype)

    in_sz = jnp.dtype(x.dtype).itemsize
    b_sz = jnp.dtype(bias.dtype).itemsize
    o_sz = jnp.dtype(out_dtype).itemsize

    # Sublane packing: f32 -> 8 rows, bf16 -> 16 rows, 1-byte dtypes -> 32 rows.
    m_align = max(8, 32 // max(in_sz, 1))

    budget = _vmem_budget_bytes()
    tm_p, tn_p, tk_p = _plan_tiles(M, N, K, in_sz, b_sz, o_sz, budget, m_align)
    tm = tm or tm_p
    tn = tn or tn_p
    tk = tk or tk_p
    assert M % tm == 0 and N % tn == 0 and K % tk == 0

    grid_m, grid_n, k_steps = M // tm, N // tn, K // tk

    vmem_needed = (2 * (tm * tk * in_sz + tk * tn * in_sz
                        + tm * tn * b_sz + tm * tn * o_sz)
                   + (0 if k_steps == 1 else tm * tn * 4))
    # Always at least what the chosen tiles need (never reject manual tiles),
    # normally min(generation budget, 2x need) to leave pipelining headroom.
    vmem_limit = int(max(min(budget, 2 * vmem_needed),
                         vmem_needed + (2 << 20), 8 << 20))

    # Bytes reflect re-streaming: x is read N/tn times, W is read M/tm times.
    cost = pl.CostEstimate(
        flops=2 * M * N * K,
        transcendentals=0,
        bytes_accessed=(M * K * in_sz * grid_n + K * N * in_sz * grid_m
                        + M * N * b_sz + M * N * o_sz),
    )

    if k_steps == 1:
        grid_spec = pltpu.PrefetchScalarGridSpec(
            num_scalar_prefetch=0,
            grid=(grid_m, grid_n),
            in_specs=[
                pl.BlockSpec((tm, K), lambda i, j: (i, 0)),    # x row tile
                pl.BlockSpec((K, tn), lambda i, j: (0, j)),    # weights col tile
                pl.BlockSpec((tm, tn), lambda i, j: (i, j)),   # bias tile
            ],
            out_specs=pl.BlockSpec((tm, tn), lambda i, j: (i, j)),
        )
        kernel = _linear_kernel_single_k
        dim_sem = ("parallel", "parallel")
    else:
        grid_spec = pltpu.PrefetchScalarGridSpec(
            num_scalar_prefetch=0,
            grid=(grid_m, grid_n, k_steps),
            in_specs=[
                pl.BlockSpec((tm, tk), lambda i, j, k: (i, k)),   # x tile
                pl.BlockSpec((tk, tn), lambda i, j, k: (k, j)),   # weights tile
                pl.BlockSpec((tm, tn), lambda i, j, k: (i, j)),   # bias (k-invariant)
            ],
            out_specs=pl.BlockSpec((tm, tn), lambda i, j, k: (i, j)),
            scratch_shapes=[pltpu.VMEM((tm, tn), jnp.float32)],   # f32 accumulator
        )
        kernel = _linear_kernel_multi_k
        dim_sem = ("parallel", "parallel", "arbitrary")

    return pl.pallas_call(
        kernel,
        out_shape=jax.ShapeDtypeStruct((M, N), out_dtype),
        grid_spec=grid_spec,
        compiler_params=pltpu.CompilerParams(
            dimension_semantics=dim_sem,
            vmem_limit_bytes=vmem_limit,
        ),
        cost_estimate=cost,
    )(x, weights, bias)


def init_params(key, input_shape, output_shape, dtype=jnp.float32):
    """Deterministic re-implementation of the module's __init__ initialization."""
    k_w, k_b = jax.random.split(key)
    # weights: (output_shape[1], input_shape[1]), Normal(mean=0, std=0.01)
    weights = 0.01 * jax.random.normal(
        k_w, (output_shape[1], input_shape[1]), dtype=dtype)
    # fan_in of a 2-D weight in torch is its second dim
    fan_in = input_shape[1]
    bound = 1.0 / math.sqrt(fan_in)
    # bias: (output_shape[0], output_shape[1]), Uniform(-bound, bound)
    bias = jax.random.uniform(
        k_b, (output_shape[0], output_shape[1]), dtype=dtype,
        minval=-bound, maxval=bound)
    return weights, bias


if __name__ == "__main__":
    # The module's forward only type-checks when input_shape[1] == output_shape[1]
    # and output_shape[0] == input_shape[0]; small lane-dense shapes chosen here.

    # --- test 1: default bf16 compute, single-K-step specialized kernel ------
    input_shape = (64, 128)
    output_shape = (64, 128)
    key = jax.random.PRNGKey(0)
    k_x, k_p = jax.random.split(key)
    x = jax.random.normal(k_x, input_shape, dtype=jnp.float32)
    weights, bias = init_params(k_p, input_shape, output_shape)

    y = linear_transform(x, weights, bias)            # bf16 compute by default
    y = jax.block_until_ready(y)
    assert y.shape == output_shape
    ref_bf16 = (jnp.dot(x.astype(jnp.bfloat16), weights.astype(jnp.bfloat16),
                        preferred_element_type=jnp.float32) + bias)
    assert jnp.allclose(y, ref_bf16, atol=1e-2, rtol=1e-2), "bf16 path mismatch"

    # --- test 2: f32 compute, forced multi-K-step accumulator kernel ---------
    input_shape2 = (128, 256)
    output_shape2 = (128, 256)
    k_x2, k_p2 = jax.random.split(jax.random.PRNGKey(1))
    x2 = jax.random.normal(k_x2, input_shape2, dtype=jnp.float32)
    w2, b2 = init_params(k_p2, input_shape2, output_shape2)

    y2 = linear_transform(x2, w2, b2, compute_dtype=None, tk=128)  # 2 K steps
    y2 = jax.block_until_ready(y2)
    ref2 = x2 @ w2 + b2
    assert y2.shape == output_shape2
    assert jnp.allclose(y2, ref2, atol=1e-5, rtol=1e-5), "f32 path mismatch"

    print("KERNEL_OK")
</pallas_src>

<mosaic_0001>
module attributes {stable_mosaic.version = 11 : i64} {
  func.func @_linear_kernel_single_k(%arg0: i32, %arg1: i32, %arg2: memref<32x128xbf16, #tpu.memory_space<vmem>>, %arg3: memref<128x128xbf16, #tpu.memory_space<vmem>>, %arg4: memref<32x128xf32, #tpu.memory_space<vmem>>, %arg5: memref<32x128xf32, #tpu.memory_space<vmem>>) attributes {dimension_semantics = [#tpu.dimension_semantics<parallel>, #tpu.dimension_semantics<parallel>], iteration_bounds = array<i64: 2, 1>, scalar_prefetch = 0 : i64, scratch_operands = 0 : i64, tpu.core_type = #tpu.core_type<tc>, window_params = [{transform_indices = @transform_0, window_bounds = array<i64: 32, 128>}, {transform_indices = @transform_1, window_bounds = array<i64: 128, 128>}, {transform_indices = @transform_2, window_bounds = array<i64: 32, 128>}, {transform_indices = @transform_3, window_bounds = array<i64: 32, 128>}]} {
    %c0 = arith.constant 0 : index
    %c0_0 = arith.constant 0 : index
    %0 = vector.load %arg2[%c0, %c0_0] : memref<32x128xbf16, #tpu.memory_space<vmem>>, vector<32x128xbf16>
    %c0_1 = arith.constant 0 : index
    %c0_2 = arith.constant 0 : index
    %1 = vector.load %arg3[%c0_1, %c0_2] : memref<128x128xbf16, #tpu.memory_space<vmem>>, vector<128x128xbf16>
    %cst = arith.constant dense<0.000000e+00> : vector<32x128xf32>
    %2 = tpu.matmul %0, %1, %cst {dimension_numbers = #tpu.dot_dimension_numbers<[1], [0], [0], [1], [0, 0, 1, 1], [], []>} : vector<32x128xbf16>, vector<128x128xbf16>, vector<32x128xf32> -> vector<32x128xf32>
    %c0_3 = arith.constant 0 : index
    %c0_4 = arith.constant 0 : index
    %3 = vector.load %arg4[%c0_3, %c0_4] : memref<32x128xf32, #tpu.memory_space<vmem>>, vector<32x128xf32>
    %4 = arith.addf %2, %3 : vector<32x128xf32>
    %c0_5 = arith.constant 0 : index
    %c0_6 = arith.constant 0 : index
    %5 = vector.load %arg5[%c0_5, %c0_6] : memref<32x128xf32, #tpu.memory_space<vmem>>, vector<32x128xf32>
    tpu.vector_store %arg5[%c0_5, %c0_6], %4 {strides = array<i32>} : memref<32x128xf32, #tpu.memory_space<vmem>>, vector<32x128xf32>,
    return
  }
  func.func @transform_0(%arg0: i32, %arg1: i32) -> (i32, i32) {
    %c0_i32 = arith.constant 0 : i32
    %c0_i32_0 = arith.constant 0 : i32
    return %arg0, %c0_i32 : i32, i32
  }
  func.func @transform_1(%arg0: i32, %arg1: i32) -> (i32, i32) {
    %c0_i32 = arith.constant 0 : i32
    %c0_i32_0 = arith.constant 0 : i32
    return %c0_i32, %arg1 : i32, i32
  }
  func.func @transform_2(%arg0: i32, %arg1: i32) -> (i32, i32) {
    %c0_i32 = arith.constant 0 : i32
    return %arg0, %arg1 : i32, i32
  }
  func.func @transform_3(%arg0: i32, %arg1: i32) -> (i32, i32) {
    %c0_i32 = arith.constant 0 : i32
    return %arg0, %arg1 : i32, i32
  }
}

</mosaic_0001>

<llo_original>
// kernel: tpu_custom_call.1
$region0: #{tpu_custom_call.1}
  #allocation0 [shape = 'u32[]', space=smem, size = 0x4, offset = 0x4, fixed_abs, tag = 'smem constant byte address 0x4 - core index']
  #allocation1 [shape = 'u32[144,128]{1,0:T(1,128)}', space=vmem, size = 0x12000, scoped, tag = 'internal scratch']
  %s0 = inlined_call_operand.hbm [shape: bf16[64,128], index: 0, kind: input, shape index: {}]
  %s1 = inlined_call_operand.hbm [shape: bf16[128,128], index: 1, kind: input, shape index: {}]
  %s2 = inlined_call_operand.hbm [shape: f32[64,128], index: 2, kind: input, shape index: {}]
  %s3 = inlined_call_operand.hbm [shape: f32[64,128], index: 3, kind: output, shape index: {}]
  %s4 = sld [smem:[#allocation0]]
  $region57: #{tpu_custom_call.1} parent=0
    _
  %s6 = ssub.s32 1, %s4
  %s7 = scalar_select 0, %s6, %s4
  $region1: #{tpu_custom_call.1} parent=0
    #allocation2 [shape = 'u8[16384]{0}', space=vmem, size = 0x4000, scoped, tag = 'input window, operand 0']
    #allocation3 [shape = 's32[2]{0}', space=sflag, size = 0x8, scoped, tag = 'scoped memory for tpu_custom_call.1']
    #allocation4 [shape = 's32[2]{0}', space=sflag, size = 0x8, scoped, tag = 'scoped memory for tpu_custom_call.1']
    #allocation5 [shape = 'u8[32768]{0}', space=vmem, size = 0x8000, scoped, tag = 'input window, operand 1, single buffered']
    #allocation6 [shape = 's32[1]{0}', space=sflag, size = 0x4, scoped, tag = 'scoped memory for tpu_custom_call.1']
    #allocation7 [shape = 'u8[32768]{0}', space=vmem, size = 0x8000, scoped, tag = 'input window, operand 2']
    #allocation8 [shape = 'u8[32768]{0}', space=vmem, size = 0x8000, scoped, tag = 'output window, operand 0']
    %8 = vsyncpa [#allocation3], 0
    %s9 = scalar_lea.sflag [#allocation3], 1
    %10 = vsyncpa %s9, 0
    %11 = vsyncpa [#allocation6], 0
    %12 = vsyncpa [#allocation4], 0
    %s13 = scalar_lea.sflag [#allocation4], 1
    %14 = vsyncpa %s13, 0
    loop: start=0, step=1, limit=4
    $region2: #{tpu_custom_call.1} parent=1 // loop_pre_header
      _
    $region3: #{tpu_custom_call.1} parent=1 // loop_header
      %s16 = sphi 0, %s20
      %p17 = scmp.ge.s32.totalorder %s16, 4
      %s23 = sphi 0, %s35
      %s24 = sphi 0, %s31
      %s25 = sphi 0, %s23
      %s26 = sphi 0, %s24
      %s27 = sphi 0, %s25
      %s28 = sphi 0, %s26
      %s38 = sphi 0, %s40
      %s41 = sphi 0, %s38
      %s42 = sphi 0, %s41
      %s58 = sphi 0, %s42
      %s64 = sphi 0, %s66
      %s67 = sphi 0, %s64
      %s68 = sphi 0, %s67
      %s84 = sphi 0, %s68
      %s92 = sphi 0, %s94
      %s95 = sphi 0, %s92
      %s96 = sphi 0, %s95
      %s112 = sphi 0, %s96
      %s120 = sphi 0, %s122
      %s123 = sphi 0, %s120
      %s124 = sphi 0, %s123
      %s140 = sphi 0, %s124
    $region4: #{tpu_custom_call.1} parent=1 // loop_header_branch
      %19 = sbr.rel (%p17) target = $region8
    $region5: #{tpu_custom_call.1} parent=1 // loop_body
      %s21 = ssub.s32 %s16, 1
      %s22 = ssub.s32 %s16, 2
      %s29 = sadd.s32 1, %s24
      %p30 = scmp.ge.s32.totalorder %s29, 1
      %s31 = scalar_select %p30, 0, %s29
      %s32 = sadd.s32 1, %s23
      %s33 = scalar_select %p30, %s32, %s23
      %p34 = scmp.ge.s32.totalorder %s33, 2
      %s35 = scalar_select %p34, 0, %s33
      %s36 = ssub.s32 %s23, %s35
      %p37 = scmp.eq.s32.totalorder %s36, 0
      %s39 = sadd.s32 %s38, 1
      %s40 = scalar_select %p37, %s38, %s39
      %p43 = pneg %p37
      %p44 = scmp.eq.s32.totalorder %s16, 1
      %p45 = por %p43, %p44
      %p46 = scmp.ne.s32.totalorder %s38, %s41
      %p47 = scmp.eq.s32.totalorder %s16, 0
      %p48 = por %p46, %p47
      %p49 = scmp.ne.s32.totalorder %s38, %s41
      %p50 = scmp.eq.s32.totalorder %s21, 1
      %p51 = por %p49, %p50
      %p52 = scmp.ne.s32.totalorder %s41, %s42
      %p53 = scmp.eq.s32.totalorder %s21, 0
      %p54 = por %p52, %p53
      %p55 = scmp.ne.s32.totalorder %s41, %s42
      %p56 = scmp.eq.s32.totalorder %s22, 1
      %p57 = por %p55, %p56
      %p59 = scmp.ne.s32.totalorder %s42, %s58
      %p60 = scmp.eq.s32.totalorder %s22, 0
      %p61 = por %p59, %p60
      %s62 = ssub.s32 %s24, %s31
      %p63 = scmp.eq.s32.totalorder %s62, 0
      %s65 = sadd.s32 %s64, 1
      %s66 = scalar_select %p63, %s64, %s65
      %p69 = pneg %p63
      %p70 = scmp.eq.s32.totalorder %s16, 1
      %p71 = por %p69, %p70
      %p72 = scmp.ne.s32.totalorder %s64, %s67
      %p73 = scmp.eq.s32.totalorder %s16, 0
      %p74 = por %p72, %p73
      %p75 = scmp.ne.s32.totalorder %s64, %s67
      %p76 = scmp.eq.s32.totalorder %s21, 1
      %p77 = por %p75, %p76
      %p78 = scmp.ne.s32.totalorder %s67, %s68
      %p79 = scmp.eq.s32.totalorder %s21, 0
      %p80 = por %p78, %p79
      %p81 = scmp.ne.s32.totalorder %s67, %s68
      %p82 = scmp.eq.s32.totalorder %s22, 1
      %p83 = por %p81, %p82
      %p85 = scmp.ne.s32.totalorder %s68, %s84
      %p86 = scmp.eq.s32.totalorder %s22, 0
      %p87 = por %p85, %p86
      %s88 = ssub.s32 %s23, %s35
      %s89 = ssub.s32 %s24, %s31
      %s90 = sor.u32 %s88, %s89
      %p91 = scmp.eq.s32.totalorder %s90, 0
      %s93 = sadd.s32 %s92, 1
      %s94 = scalar_select %p91, %s92, %s93
      %p97 = pneg %p91
      %p98 = scmp.eq.s32.totalorder %s16, 1
      %p99 = por %p97, %p98
      %p100 = scmp.ne.s32.totalorder %s92, %s95
      %p101 = scmp.eq.s32.totalorder %s16, 0
      %p102 = por %p100, %p101
      %p103 = scmp.ne.s32.totalorder %s92, %s95
      %p104 = scmp.eq.s32.totalorder %s21, 1
      %p105 = por %p103, %p104
      %p106 = scmp.ne.s32.totalorder %s95, %s96
      %p107 = scmp.eq.s32.totalorder %s21, 0
      %p108 = por %p106, %p107
      %p109 = scmp.ne.s32.totalorder %s95, %s96
      %p110 = scmp.eq.s32.totalorder %s22, 1
      %p111 = por %p109, %p110
      %p113 = scmp.ne.s32.totalorder %s96, %s112
      %p114 = scmp.eq.s32.totalorder %s22, 0
      %p115 = por %p113, %p114
      %s116 = ssub.s32 %s23, %s35
      %s117 = ssub.s32 %s24, %s31
      %s118 = sor.u32 %s116, %s117
      %p119 = scmp.eq.s32.totalorder %s118, 0
      %s121 = sadd.s32 %s120, 1
      %s122 = scalar_select %p119, %s120, %s121
      %p125 = pneg %p119
      %p126 = scmp.eq.s32.totalorder %s16, 1
      %p127 = por %p125, %p126
      %p128 = scmp.ne.s32.totalorder %s120, %s123
      %p129 = scmp.eq.s32.totalorder %s16, 0
      %p130 = por %p128, %p129
      %p131 = scmp.ne.s32.totalorder %s120, %s123
      %p132 = scmp.eq.s32.totalorder %s21, 1
      %p133 = por %p131, %p132
      %p134 = scmp.ne.s32.totalorder %s123, %s124
      %p135 = scmp.eq.s32.totalorder %s21, 0
      %p136 = por %p134, %p135
      %p137 = scmp.ne.s32.totalorder %s123, %s124
      %p138 = scmp.eq.s32.totalorder %s22, 1
      %p139 = por %p137, %p138
      %p141 = scmp.ne.s32.totalorder %s124, %s140
      %p142 = scmp.eq.s32.totalorder %s22, 0
      %p143 = por %p141, %p142
      %p144 = scmp.le.s32.totalorder 1, %s16
      %p145 = scmp.lt.s32.totalorder %s16, 3
      %p146 = pnand %p144, %p145
      %p147 = pneg %p146
      // Predicated region
      $region9: #{tpu_custom_call.1} parent=5 // pred_check
        _
      $region10: #{tpu_custom_call.1} parent=5 // pred_check_branch
        %149 = sbr.rel (%p146) target = $region12
      $region11: #{tpu_custom_call.1} parent=5 // pred_region
        %s150 = ssub.s32 %s16, 1
        // Predicated region
        $region13: #{tpu_custom_call.1} parent=11 // pred_check
          %p151 = pneg %p80
        $region14: #{tpu_custom_call.1} parent=11 // pred_check_branch
          %153 = sbr.rel (%p151) target = $region16
        $region15: #{tpu_custom_call.1} parent=11 // pred_region
          %s155 = ssub.s32 1024, 1024
          %156 = vsyncadd [#allocation6], %s155
          %s157 = smul.addr %s26, 64
          %s158 = scalar_lea.hbm %s1, %s157
          %s159 = sshll.u32 [#allocation5], 4
          %s160 = int_to_ptr.vmem [resolvable:$true] %s159
          %165 = dma.hbm_to_vmem [thread:$0]  %s158, 1024, %s160, [#allocation6], 64, 64, 4
        $region16: #{tpu_custom_call.1} parent=11 // pred_fallthru
          _
      $region12: #{tpu_custom_call.1} parent=5 // pred_fallthru
        _
      %p166 = scmp.lt.s32.totalorder %s16, 2
      // Predicated region
      $region17: #{tpu_custom_call.1} parent=5 // pred_check
        %p167 = pneg %p166
      $region18: #{tpu_custom_call.1} parent=5 // pred_check_branch
        %169 = sbr.rel (%p167) target = $region20
      $region19: #{tpu_custom_call.1} parent=5 // pred_region
        // Predicated region
        $region21: #{tpu_custom_call.1} parent=19 // pred_check
          %p170 = pneg %p48
        $region22: #{tpu_custom_call.1} parent=19 // pred_check_branch
          %172 = sbr.rel (%p170) target = $region24
        $region23: #{tpu_custom_call.1} parent=19 // pred_region
          %s173 = sand.u32 %s16, 1
          %s174 = scalar_lea.sflag [#allocation3], %s173
          %s175 = sand.u32 %s38, 1
          %s176 = smul.addr %s175, 16
          %s177 = scalar_lea.vmem [#allocation2], %s176
          %s178 = smul.u32 4, %s23
          %s180 = ssub.s32 256, 256
          %181 = vsyncadd %s174, %s180
          %s182 = smul.addr %s178, 64
          %s183 = scalar_lea.hbm %s0, %s182
          %s184 = sshll.u32 %s177, 4
          %s185 = int_to_ptr.vmem [resolvable:$true] %s184
          %190 = dma.hbm_to_vmem [thread:$0]  %s183, 256, %s185, %s174, 64, 64, 4
        $region24: #{tpu_custom_call.1} parent=19 // pred_fallthru
          _
        // Predicated region
        $region25: #{tpu_custom_call.1} parent=19 // pred_check
          %p191 = pneg %p102
        $region26: #{tpu_custom_call.1} parent=19 // pred_check_branch
          %193 = sbr.rel (%p191) target = $region28
        $region27: #{tpu_custom_call.1} parent=19 // pred_region
          %s194 = sand.u32 %s16, 1
          %s195 = scalar_lea.sflag [#allocation3], %s194
          %s196 = sand.u32 %s92, 1
          %s197 = smul.addr %s196, 32
          %s198 = scalar_lea.vmem [#allocation7], %s197
          %s199 = smul.u32 4, %s23
          %s201 = ssub.s32 512, 512
          %202 = vsyncadd %s195, %s201
          %s203 = sadd.s32 %s24, %s199
          %s204 = smul.addr %s203, 128
          %s205 = scalar_lea.hbm %s2, %s204
          %s206 = sshll.u32 %s198, 4
          %s207 = int_to_ptr.vmem [resolvable:$true] %s206
          %212 = dma.hbm_to_vmem [thread:$0]  %s205, 512, %s207, %s195, 128, 128, 8
        $region28: #{tpu_custom_call.1} parent=19 // pred_fallthru
          _
      $region20: #{tpu_custom_call.1} parent=5 // pred_fallthru
        _
      %p213 = scmp.le.s32.totalorder 1, %s16
      %p214 = scmp.lt.s32.totalorder %s16, 3
      %p215 = pnand %p213, %p214
      %p216 = pneg %p215
      // Predicated region
      $region29: #{tpu_custom_call.1} parent=5 // pred_check
        _
      $region30: #{tpu_custom_call.1} parent=5 // pred_check_branch
        %218 = sbr.rel (%p215) target = $region32
      $region31: #{tpu_custom_call.1} parent=5 // pred_region
        %s219 = ssub.s32 %s16, 1
        %s220 = sand.u32 %s21, 1
        %s221 = scalar_lea.sflag [#allocation3], %s220
        %s222 = sand.u32 %s41, 1
        %s223 = smul.addr %s222, 16
        %s224 = scalar_lea.vmem [#allocation2], %s223
        // Predicated region
        $region33: #{tpu_custom_call.1} parent=31 // pred_check
          %p225 = pneg %p54
        $region34: #{tpu_custom_call.1} parent=31 // pred_check_branch
          %227 = sbr.rel (%p225) target = $region36
        $region35: #{tpu_custom_call.1} parent=31 // pred_region
          %228 = dma.done %s221, 256
        $region36: #{tpu_custom_call.1} parent=31 // pred_fallthru
          _
        // Predicated region
        $region37: #{tpu_custom_call.1} parent=31 // pred_check
          %p229 = pneg %p80
        $region38: #{tpu_custom_call.1} parent=31 // pred_check_branch
          %231 = sbr.rel (%p229) target = $region40
        $region39: #{tpu_custom_call.1} parent=31 // pred_region
          %232 = dma.done [#allocation6], 1024
        $region40: #{tpu_custom_call.1} parent=31 // pred_fallthru
          _
        %s233 = sand.u32 %s21, 1
        %s234 = scalar_lea.sflag [#allocation3], %s233
        %s235 = sand.u32 %s95, 1
        %s236 = smul.addr %s235, 32
        %s237 = scalar_lea.vmem [#allocation7], %s236
        // Predicated region
        $region41: #{tpu_custom_call.1} parent=31 // pred_check
          %p238 = pneg %p108
        $region42: #{tpu_custom_call.1} parent=31 // pred_check_branch
          %240 = sbr.rel (%p238) target = $region44
        $region43: #{tpu_custom_call.1} parent=31 // pred_region
          %241 = dma.done %s234, 512
        $region44: #{tpu_custom_call.1} parent=31 // pred_fallthru
          _
        %s242 = sand.u32 %s21, 1
        %s243 = scalar_lea.sflag [#allocation3], %s242
        %s244 = sand.u32 %s41, 1
        %s245 = smul.addr %s244, 16
        %s246 = scalar_lea.vmem [#allocation2], %s245
        %p247 = pneg %p54
        %p248 = pneg %p51
        %p249 = pneg %p80
        %p250 = pneg %p77
        %s251 = sand.u32 %s21, 1
        %s252 = scalar_lea.sflag [#allocation3], %s251
        %s253 = sand.u32 %s95, 1
        %s254 = smul.addr %s253, 32
        %s255 = scalar_lea.vmem [#allocation7], %s254
        %p256 = pneg %p108
        %p257 = pneg %p105
        %p258 = pneg %p136
        %p259 = pneg %p133
        %s260 = sand.u32 %s123, 1
        %s261 = scalar_lea.sflag [#allocation4], %s260
        %s262 = sand.u32 %s123, 1
        %s263 = smul.addr %s262, 32
        %s264 = scalar_lea.vmem [#allocation8], %s263
        %s265 = smul.u32 4, %s25
        %s266 = smul.u32 4, %s25
        %s267 = smul.u32 4, %s25
        %v269 = vld [vmem:[%s224] sm:$0xf]
        %v270 = vld [vmem:[%s224 + $0x4] sm:$0xf]
        %v271 = vld [vmem:[%s224 + $0x8] sm:$0xf]
        %v272 = vld [vmem:[%s224 + $0xc] sm:$0xf]
        %v273 = vld [vmem:[#allocation5] sm:$0xf]
        %v274 = vld [vmem:[#allocation5 + $0x4] sm:$0xf]
        %v275 = vld [vmem:[#allocation5 + $0x8] sm:$0xf]
        %v276 = vld [vmem:[#allocation5 + $0xc] sm:$0xf]
        %v277 = vld [vmem:[#allocation5 + $0x10] sm:$0xf]
        %v278 = vld [vmem:[#allocation5 + $0x14] sm:$0xf]
        %v279 = vld [vmem:[#allocation5 + $0x18] sm:$0xf]
        %v280 = vld [vmem:[#allocation5 + $0x1c] sm:$0xf]
        %v281 = vld [vmem:[#allocation5 + $0x20] sm:$0xf]
        %v282 = vld [vmem:[#allocation5 + $0x24] sm:$0xf]
        %v283 = vld [vmem:[#allocation5 + $0x28] sm:$0xf]
        %v284 = vld [vmem:[#allocation5 + $0x2c] sm:$0xf]
        %v285 = vld [vmem:[#allocation5 + $0x30] sm:$0xf]
        %v286 = vld [vmem:[#allocation5 + $0x34] sm:$0xf]
        %v287 = vld [vmem:[#allocation5 + $0x38] sm:$0xf]
        %v288 = vld [vmem:[#allocation5 + $0x3c] sm:$0xf]
        %v289 = vld [vmem:[%s237] sm:$0xff]
        %v290 = vld [vmem:[%s237 + $0x8] sm:$0xff]
        %v291 = vld [vmem:[%s237 + $0x10] sm:$0xff]
        %v292 = vld [vmem:[%s237 + $0x18] sm:$0xff]
        %v297 = vunpack.c.l.b16 %v269
        %v298 = vunpack.c.l.b16 %v270
        %v299 = vunpack.c.l.b16 %v271
        %v300 = vunpack.c.l.b16 %v272
        %v301 = vpack.c.b16 %v298, %v297
        %v302 = vpack.c.b16 %v300, %v299
        %v321 = vunpack.c.l.b16 %v273
        %v322 = vunpack.c.l.b16 %v274
        %v323 = vunpack.c.l.b16 %v275
        %v324 = vunpack.c.l.b16 %v276
        %v325 = vunpack.c.l.b16 %v277
        %v326 = vunpack.c.l.b16 %v278
        %v327 = vunpack.c.l.b16 %v279
        %v328 = vunpack.c.l.b16 %v280
        %v329 = vunpack.c.l.b16 %v281
        %v330 = vunpack.c.l.b16 %v282
        %v331 = vunpack.c.l.b16 %v283
        %v332 = vunpack.c.l.b16 %v284
        %v333 = vunpack.c.l.b16 %v285
        %v334 = vunpack.c.l.b16 %v286
        %v335 = vunpack.c.l.b16 %v287
        %v336 = vunpack.c.l.b16 %v288
        %v337 = vpack.c.b16 %v322, %v321
        %v338 = vpack.c.b16 %v324, %v323
        %v339 = vpack.c.b16 %v326, %v325
        %v340 = vpack.c.b16 %v328, %v327
        %v341 = vpack.c.b16 %v330, %v329
        %v342 = vpack.c.b16 %v332, %v331
        %v343 = vpack.c.b16 %v334, %v333
        %v344 = vpack.c.b16 %v336, %v335
        %353 = vmatprep.subr.bf16.mxu0 0
        %354 = vmatpush1.bf16.msra.mxu0 %v337
        %355 = vmatprep.subr.bf16.mxu0 0
        %356 = vmatpush1.bf16.msra.mxu0 %v338
        %357 = vmatprep.subr.bf16.mxu0 0
        %358 = vmatpush1.bf16.msra.mxu0 %v339
        %359 = vmatprep.subr.bf16.mxu0 0
        %360 = vmatpush1.bf16.msra.mxu0 %v340
        %361 = vmatprep.subr.bf16.mxu0 0
        %362 = vmatpush1.bf16.msra.mxu0 %v341
        %363 = vmatprep.subr.bf16.mxu0 0
        %364 = vmatpush1.bf16.msra.mxu0 %v342
        %365 = vmatprep.subr.bf16.mxu0 0
        %366 = vmatpush1.bf16.msra.mxu0 %v343
        %367 = vmatprep.subr.bf16.mxu0 0
        %368 = vmatpush1.bf16.msra.mxu0 %v344
        %369 = vmatprep.subr.bf16.mxu0 0
        %370 = vmatpush1.bf16.msra.mxu0 0
        %371 = vmatprep.subr.bf16.mxu0 0
        %372 = vmatpush1.bf16.msra.mxu0 0
        %373 = vmatprep.subr.bf16.mxu0 0
        %374 = vmatpush1.bf16.msra.mxu0 0
        %375 = vmatprep.subr.bf16.mxu0 0
        %376 = vmatpush1.bf16.msra.mxu0 0
        %377 = vmatprep.subr.bf16.mxu0 0
        %378 = vmatpush1.bf16.msra.mxu0 0
        %379 = vmatprep.subr.bf16.mxu0 0
        %380 = vmatpush1.bf16.msra.mxu0 0
        %381 = vmatprep.subr.bf16.mxu0 0
        %382 = vmatpush1.bf16.msra.mxu0 0
        %383 = vmatprep.subr.bf16.mxu0 0
        %384 = vmatpush1.bf16.msra.mxu0 0
        %385 = vmatprep.mubr.bf16.mxu0 0
        %386 = vmatmul.mubr.bf16.gmra.mrb[0].mxu0 %v301
        %v387 = vpop.f32.mrb[0].mxu0
        %v388 = vadd.f32 %v289, %v387
        %v389 = vpop.f32.mrb[0].mxu0
        %v390 = vpop.f32.mrb[0].mxu0
        %v391 = vadd.f32 %v290, %v390
        %v392 = vpop.f32.mrb[0].mxu0
        %393 = vmatprep.mubr.bf16.mxu0 0
        %394 = vmatmul.mubr.bf16.gmra.mrb[0].mxu0 %v302
        %v395 = vpop.f32.mrb[0].mxu0
        %v396 = vadd.f32 %v291, %v395
        %v397 = vpop.f32.mrb[0].mxu0
        %v398 = vpop.f32.mrb[0].mxu0
        %v399 = vadd.f32 %v292, %v398
        %v400 = vpop.f32.mrb[0].mxu0
        %401 = vdwg.mxu0
        %402 = vst [vmem:[%s264] sm:$0xff] %v388
        %403 = vst [vmem:[%s264 + $0x8] sm:$0xff] %v391
        %404 = vst [vmem:[%s264 + $0x10] sm:$0xff] %v396
        %405 = vst [vmem:[%s264 + $0x18] sm:$0xff] %v399
        %s406 = sand.u32 %s123, 1
        %s407 = scalar_lea.sflag [#allocation4], %s406
        %s408 = sand.u32 %s123, 1
        %s409 = smul.addr %s408, 32
        %s410 = scalar_lea.vmem [#allocation8], %s409
        // Predicated region
        $region45: #{tpu_custom_call.1} parent=31 // pred_check
          %p411 = pneg %p133
        $region46: #{tpu_custom_call.1} parent=31 // pred_check_branch
          %413 = sbr.rel (%p411) target = $region48
        $region47: #{tpu_custom_call.1} parent=31 // pred_region
          %s414 = smul.u32 4, %s25
          %s416 = ssub.s32 512, 512
          %417 = vsyncadd %s407, %s416
          %s418 = sadd.s32 %s26, %s414
          %s419 = smul.addr %s418, 128
          %s420 = scalar_lea.hbm %s3, %s419
          %s421 = sshll.u32 %s410, 4
          %s422 = int_to_ptr.vmem [resolvable:$true] %s421
          %427 = dma.vmem_to_hbm [thread:$0]  %s422, 512, %s420, %s407, 128, 128, 8
        $region48: #{tpu_custom_call.1} parent=31 // pred_fallthru
          _
      $region32: #{tpu_custom_call.1} parent=5 // pred_fallthru
        _
      %p428 = scmp.le.s32.totalorder 2, %s16
      // Predicated region
      $region49: #{tpu_custom_call.1} parent=5 // pred_check
        %p429 = pneg %p428
      $region50: #{tpu_custom_call.1} parent=5 // pred_check_branch
        %431 = sbr.rel (%p429) target = $region52
      $region51: #{tpu_custom_call.1} parent=5 // pred_region
        %s432 = ssub.s32 %s16, 2
        // Predicated region
        $region53: #{tpu_custom_call.1} parent=51 // pred_check
          %p433 = pneg %p139
        $region54: #{tpu_custom_call.1} parent=51 // pred_check_branch
          %435 = sbr.rel (%p433) target = $region56
        $region55: #{tpu_custom_call.1} parent=51 // pred_region
          %s436 = sand.u32 %s124, 1
          %s437 = scalar_lea.sflag [#allocation4], %s436
          %s438 = sand.u32 %s124, 1
          %s439 = smul.addr %s438, 32
          %s440 = scalar_lea.vmem [#allocation8], %s439
          %441 = dma.done %s437, 512
        $region56: #{tpu_custom_call.1} parent=51 // pred_fallthru
          _
      $region52: #{tpu_custom_call.1} parent=5 // pred_fallthru
        _
    $region6: #{tpu_custom_call.1} parent=1 // loop_footer
      %s20 = sadd.s32 1, %s16
    $region7: #{tpu_custom_call.1} parent=1 // loop_footer_branch
      %15 = sbr.rel target = $region3
    $region8: #{tpu_custom_call.1} parent=1 // loop_exit
      _
    %442 = vsyncpa [#allocation3], 1
    %s443 = scalar_lea.sflag [#allocation3], 1
    %444 = vsyncpa %s443, 1
    %445 = vsyncpa [#allocation6], 1
    %446 = vsyncpa [#allocation4], 1
    %s447 = scalar_lea.sflag [#allocation4], 1
    %448 = vsyncpa %s447, 1

</llo_original>
